<compile_context>
chip_gen: v6e
topology: v6e:2x2x1
jax: 0.10.0
libtpu: 0.0.40
codegen_flags: <defaults>
</compile_context>

<pallas_src>
import jax
import jax.numpy as jnp
from jax.experimental import pallas as pl
from jax.experimental.pallas import tpu as pltpu


def _additive_attention_kernel(x_ref, h_ref, bias_ref, mb_ref, w_ref, v_ref, o_ref):
    """One grid step processes TB batch elements.

    x_ref    [TB*S, K]  fused (h | pse | poe | l) features, K = H + 2P + L
    h_ref    [TB, S, H] raw hidden states (for the weighted sum)
    bias_ref [TB, 1, A] f32 per-batch bias  q@Wq + g@Wg  (hoisted to wrapper)
    mb_ref   [TB, 1, S] f32 additive mask bias (-1e9 on masked positions)
    w_ref    [K, A]     fused projection weight (Wh|Ws|Wo|Wl stacked along K)
    v_ref    [1, 1, A]  f32 scoring vector
    o_ref    [TB, 1, H] output (f32)
    """
    f32 = jnp.float32
    TB, S, _ = h_ref.shape
    A = w_ref.shape[-1]

    # 1) Single fused projection over all TB*S rows (one MXU matmul, f32 acc).
    m = jnp.dot(x_ref[...], w_ref[...], preferred_element_type=f32)      # [TB*S, A]

    # 2) Add per-batch (q/g) bias, tanh in f32 (no bf16 VPU/EUP dependence).
    nl = jnp.tanh(m.reshape(TB, S, A) + bias_ref[...])                   # [TB, S, A]

    # 3) v-scoring as a batched MXU matmul -> lane-dense logits [TB, 1, S].
    vb = jnp.broadcast_to(v_ref[...], (TB, 1, A))
    logits = jnp.einsum("bqa,bsa->bqs", vb, nl, preferred_element_type=f32)
    logits = logits + mb_ref[...]                                        # additive mask

    # 4) Softmax over the sequence (lane) axis, fully lane-dense.
    mx = jnp.max(logits, axis=-1, keepdims=True)                         # [TB, 1, 1]
    p = jnp.exp(logits - mx)
    alpha = p * pl.reciprocal(jnp.sum(p, axis=-1, keepdims=True), approx=True)

    # 5) Weighted sum of hidden states as a batched MXU matmul.
    o = jnp.einsum("bqs,bsh->bqh", alpha.astype(h_ref.dtype), h_ref[...],
                   preferred_element_type=f32)                           # [TB, 1, H]
    o_ref[...] = o.astype(o_ref.dtype)


def additive_attention_pallas(h, q, pse, poe, l, g, mask_f32, params, *,
                              tb=8, compute_dtype=jnp.float32):
    """h:[B,S,H] q:[B,H] pse/poe:[B,S,P] l:[B,S,L] g:[B,G] mask_f32:[B,S] -> [B,H] f32."""
    B, S, H = h.shape
    P = pse.shape[-1]
    L = l.shape[-1]
    A = params["Wh"].shape[-1]
    K = H + 2 * P + L

    # Fuse the four per-token projections into a single (TB*S, K) x (K, A) matmul.
    x = jnp.concatenate([h, pse, poe, l], axis=-1)                        # [B, S, K]
    w = jnp.concatenate([params["Wh"], params["Ws"],
                         params["Wo"], params["Wl"]], axis=0)             # [K, A]

    # Hoist the tiny per-batch projections (q@Wq + g@Wg) out of the kernel.
    bias = (q.astype(jnp.float32) @ params["Wq"].astype(jnp.float32)
            + g.astype(jnp.float32) @ params["Wg"].astype(jnp.float32))   # [B, A]
    bias = bias.reshape(B, 1, A)

    # Pre-fold the mask into an additive bias, lane-dense layout [B, 1, S].
    # Note: a fully-masked row degenerates to a uniform softmax, same as the
    # PyTorch reference.
    mask_bias = (mask_f32.astype(jnp.float32) * jnp.float32(-1e9)).reshape(B, 1, S)

    v = params["v"].reshape(1, 1, A).astype(jnp.float32)

    # bf16 inputs halve HBM traffic on v6e/v7x; accumulation stays f32 in-kernel.
    x = x.astype(compute_dtype)
    h_in = h.astype(compute_dtype)
    w = w.astype(compute_dtype)

    # Batch TB elements per grid step to amortize per-step pipeline overhead.
    # (tb*S must be a multiple of 8 or cover the whole batch; tb=8 always works.)
    tb = int(max(1, min(tb, B)))
    b_pad = -(-B // tb) * tb
    if b_pad != B:
        pad = b_pad - B
        x = jnp.pad(x, ((0, pad), (0, 0), (0, 0)))
        h_in = jnp.pad(h_in, ((0, pad), (0, 0), (0, 0)))
        bias = jnp.pad(bias, ((0, pad), (0, 0), (0, 0)))
        mask_bias = jnp.pad(mask_bias, ((0, pad), (0, 0), (0, 0)))

    # Present the fused features as a 2-D (B_pad*S, K) slab so the kernel does
    # a plain 2-D matmul with no tricky in-kernel reshapes of DMA'd data.
    x2d = x.reshape(b_pad * S, K)

    batch3 = lambda i: (i, 0, 0)
    out = pl.pallas_call(
        _additive_attention_kernel,
        out_shape=jax.ShapeDtypeStruct((b_pad, 1, H), jnp.float32),
        grid_spec=pltpu.PrefetchScalarGridSpec(
            num_scalar_prefetch=0,
            grid=(b_pad // tb,),
            in_specs=[
                pl.BlockSpec((tb * S, K), lambda i: (i, 0)),      # fused features
                pl.BlockSpec((tb, S, H), batch3),                 # h
                pl.BlockSpec((tb, 1, A), batch3),                 # q/g bias
                pl.BlockSpec((tb, 1, S), batch3),                 # mask bias
                pl.BlockSpec((K, A), lambda i: (0, 0)),           # fused weight
                pl.BlockSpec((1, 1, A), lambda i: (0, 0, 0)),     # v
            ],
            out_specs=pl.BlockSpec((tb, 1, H), batch3),
        ),
        compiler_params=pltpu.CompilerParams(
            dimension_semantics=("parallel",),   # grid steps independent (megacore OK)
            vmem_limit_bytes=32 * 1024 * 1024,   # within default on every generation
        ),
    )(x2d, h_in, bias, mask_bias, w, v)
    return out.reshape(b_pad, H)[:B]


def additive_attention_ref(h, q, pse, poe, l, g, mask_bool, params):
    """Pure-JAX (f32) reference mirroring the PyTorch forward."""
    mh = h @ params["Wh"]
    mq = (q @ params["Wq"])[:, None, :]
    ms = pse @ params["Ws"]
    mo = poe @ params["Wo"]
    ml = l @ params["Wl"]
    mg = (g @ params["Wg"])[:, None, :]
    nl = jnp.tanh(mh + mq + ms + mo + ml + mg)
    logits = jnp.sum(nl * params["v"], axis=-1)
    logits = jnp.where(mask_bool, -1e9, logits)
    alpha = jax.nn.softmax(logits, axis=1)
    return jnp.sum(h * alpha[:, :, None], axis=1)


if __name__ == "__main__":
    # Model dims (small, consistent with the module).
    H = 32          # hidden_state_size
    NUM_POS = 20    # num_position_embeddings (padding_idx = 19)
    P = 16          # position_embedding_size
    L = 8           # local_size
    G = 32          # global_size
    A = 32          # attention_size

    key = jax.random.PRNGKey(0)
    keys = jax.random.split(key, 24)

    def init_w(k, shape, scale=0.02):
        return (scale * jax.random.normal(k, shape)).astype(jnp.float32)

    # Linear weights stored pre-transposed: [in_features, A]; v as [1, A].
    params = {
        "Wh": init_w(keys[0], (H, A)),
        "Wq": init_w(keys[1], (H, A)),
        "Ws": init_w(keys[2], (P, A)),
        "Wo": init_w(keys[3], (P, A)),
        "Wl": init_w(keys[4], (L, A)),
        "Wg": init_w(keys[5], (G, A)),
        "v":  init_w(keys[6], (1, A)),
    }
    # Embedding tables with zeroed padding row (padding_idx = NUM_POS - 1).
    Ps_table = init_w(keys[7], (NUM_POS, P)).at[NUM_POS - 1].set(0.0)
    Po_table = init_w(keys[8], (NUM_POS, P)).at[NUM_POS - 1].set(0.0)

    def make_inputs(ks, B, S):
        h = init_w(ks[0], (B, S, H), scale=1.0)
        q = init_w(ks[1], (B, H), scale=1.0)
        ps_idx = jax.random.randint(ks[2], (B, S), 0, NUM_POS)
        po_idx = jax.random.randint(ks[3], (B, S), 0, NUM_POS)
        l_feat = init_w(ks[4], (B, S, L), scale=1.0)
        g_feat = init_w(ks[5], (B, G), scale=1.0)
        mask_bool = jax.random.bernoulli(ks[6], 0.25, (B, S))
        # Plain-JAX glue: embedding gathers; dropout layers are identity (eval).
        pse = Ps_table[ps_idx]   # [B, S, P]
        poe = Po_table[po_idx]   # [B, S, P]
        return h, q, pse, poe, l_feat, g_feat, mask_bool

    # --- Test 1: f32, tiny batch (B=2, S=8) -----------------------------------
    h, q, pse, poe, l_feat, g_feat, mask_bool = make_inputs(keys[9:16], B=2, S=8)
    out = additive_attention_pallas(h, q, pse, poe, l_feat, g_feat,
                                    mask_bool.astype(jnp.float32), params, tb=8)
    out = jax.block_until_ready(out)
    ref = additive_attention_ref(h, q, pse, poe, l_feat, g_feat, mask_bool, params)
    assert out.shape == (2, H)
    assert jnp.allclose(out, ref, atol=2e-3, rtol=2e-3), "f32 mismatch vs reference"

    # --- Test 2: bf16 inputs (v6e/v7x bandwidth path), TB batching + padding ---
    h2, q2, pse2, poe2, l2, g2, mb2 = make_inputs(keys[16:23], B=12, S=8)
    out2 = additive_attention_pallas(h2, q2, pse2, poe2, l2, g2,
                                     mb2.astype(jnp.float32), params,
                                     tb=8, compute_dtype=jnp.bfloat16)
    out2 = jax.block_until_ready(out2)
    ref2 = additive_attention_ref(h2, q2, pse2, poe2, l2, g2, mb2, params)
    assert out2.shape == (12, H)
    assert jnp.allclose(out2, ref2, atol=3e-2, rtol=3e-2), "bf16 mismatch vs reference"

    print("KERNEL_OK")
</pallas_src>

<mosaic_0001>
module attributes {stable_mosaic.version = 11 : i64} {
  func.func @_additive_attention_kernel(%arg0: i32, %arg1: memref<16x72xf32, #tpu.memory_space<vmem>>, %arg2: memref<2x8x32xf32, #tpu.memory_space<vmem>>, %arg3: memref<2x1x32xf32, #tpu.memory_space<vmem>>, %arg4: memref<2x1x8xf32, #tpu.memory_space<vmem>>, %arg5: memref<72x32xf32, #tpu.memory_space<vmem>>, %arg6: memref<1x1x32xf32, #tpu.memory_space<vmem>>, %arg7: memref<2x1x32xf32, #tpu.memory_space<vmem>>) attributes {dimension_semantics = [#tpu.dimension_semantics<parallel>], iteration_bounds = array<i64: 1>, scalar_prefetch = 0 : i64, scratch_operands = 0 : i64, tpu.core_type = #tpu.core_type<tc>, window_params = [{transform_indices = @transform_0, window_bounds = array<i64: 16, 72>}, {transform_indices = @transform_1, window_bounds = array<i64: 2, 8, 32>}, {transform_indices = @transform_2, window_bounds = array<i64: 2, 1, 32>}, {transform_indices = @transform_3, window_bounds = array<i64: 2, 1, 8>}, {pipeline_mode = #tpu.pipeline_mode<synchronous>, transform_indices = @transform_4, window_bounds = array<i64: 72, 32>}, {pipeline_mode = #tpu.pipeline_mode<synchronous>, transform_indices = @transform_5, window_bounds = array<i64: 1, 1, 32>}, {transform_indices = @transform_6, window_bounds = array<i64: 2, 1, 32>}]} {
    %c0 = arith.constant 0 : index
    %c0_0 = arith.constant 0 : index
    %0 = vector.load %arg1[%c0, %c0_0] : memref<16x72xf32, #tpu.memory_space<vmem>>, vector<16x72xf32>
    %c0_1 = arith.constant 0 : index
    %c0_2 = arith.constant 0 : index
    %1 = vector.load %arg5[%c0_1, %c0_2] : memref<72x32xf32, #tpu.memory_space<vmem>>, vector<72x32xf32>
    %cst = arith.constant dense<0.000000e+00> : vector<16x32xf32>
    %2 = tpu.matmul %0, %1, %cst {dimension_numbers = #tpu.dot_dimension_numbers<[1], [0], [0], [1], [0, 0, 1, 1], [], []>} : vector<16x72xf32>, vector<72x32xf32>, vector<16x32xf32> -> vector<16x32xf32>
    %3 = vector.shape_cast %2 : vector<16x32xf32> to vector<2x8x32xf32>
    %c0_3 = arith.constant 0 : index
    %c0_4 = arith.constant 0 : index
    %c0_5 = arith.constant 0 : index
    %4 = vector.load %arg3[%c0_3, %c0_4, %c0_5] : memref<2x1x32xf32, #tpu.memory_space<vmem>>, vector<2x1x32xf32>
    %5 = vector.broadcast %4 : vector<2x1x32xf32> to vector<2x8x32xf32>
    %6 = arith.addf %3, %5 : vector<2x8x32xf32>
    %7 = math.tanh %6 : vector<2x8x32xf32>
    %c0_6 = arith.constant 0 : index
    %c0_7 = arith.constant 0 : index
    %c0_8 = arith.constant 0 : index
    %8 = vector.load %arg6[%c0_6, %c0_7, %c0_8] : memref<1x1x32xf32, #tpu.memory_space<vmem>>, vector<1x1x32xf32>
    %9 = vector.shape_cast %8 : vector<1x1x32xf32> to vector<1x1x32xf32>
    %10 = vector.broadcast %9 : vector<1x1x32xf32> to vector<2x1x32xf32>
    "tpu.trace_start"() <{level = 10 : i32, message = "bqa,bsa->bqs"}> : () -> ()
    %cst_9 = arith.constant dense<0.000000e+00> : vector<2x1x8xf32>
    %11 = tpu.matmul %10, %7, %cst_9 {dimension_numbers = #tpu.dot_dimension_numbers<[2], [2], [1], [1], [0, 0, 0, 1, 1, 1], [0], [0]>} : vector<2x1x32xf32>, vector<2x8x32xf32>, vector<2x1x8xf32> -> vector<2x1x8xf32>
    "tpu.trace_stop"() : () -> ()
    %c0_10 = arith.constant 0 : index
    %c0_11 = arith.constant 0 : index
    %c0_12 = arith.constant 0 : index
    %12 = vector.load %arg4[%c0_10, %c0_11, %c0_12] : memref<2x1x8xf32, #tpu.memory_space<vmem>>, vector<2x1x8xf32>
    %13 = arith.addf %11, %12 : vector<2x1x8xf32>
    %cst_13 = arith.constant dense<0xFF800000> : vector<2x1xf32>
    %14 = vector.multi_reduction <maximumf>, %13, %cst_13 [2] : vector<2x1x8xf32> to vector<2x1xf32>
    %15 = vector.shape_cast %14 : vector<2x1xf32> to vector<2x1x1xf32>
    %16 = vector.broadcast %15 : vector<2x1x1xf32> to vector<2x1x8xf32>
    %17 = arith.subf %13, %16 : vector<2x1x8xf32>
    %18 = math.exp %17 : vector<2x1x8xf32>
    %cst_14 = arith.constant dense<0.000000e+00> : vector<2x1xf32>
    %19 = vector.multi_reduction <add>, %18, %cst_14 [2] : vector<2x1x8xf32> to vector<2x1xf32>
    %20 = vector.shape_cast %19 : vector<2x1xf32> to vector<2x1x1xf32>
    %21 = tpu.reciprocal %20 {approx = true} : vector<2x1x1xf32> -> vector<2x1x1xf32>
    %22 = vector.broadcast %21 : vector<2x1x1xf32> to vector<2x1x8xf32>
    %23 = arith.mulf %18, %22 : vector<2x1x8xf32>
    %c0_15 = arith.constant 0 : index
    %c0_16 = arith.constant 0 : index
    %c0_17 = arith.constant 0 : index
    %24 = vector.load %arg2[%c0_15, %c0_16, %c0_17] : memref<2x8x32xf32, #tpu.memory_space<vmem>>, vector<2x8x32xf32>
    "tpu.trace_start"() <{level = 10 : i32, message = "bqs,bsh->bqh"}> : () -> ()
    %cst_18 = arith.constant dense<0.000000e+00> : vector<2x1x32xf32>
    %25 = tpu.matmul %23, %24, %cst_18 {dimension_numbers = #tpu.dot_dimension_numbers<[2], [1], [1], [2], [0, 0, 0, 1, 1, 2], [0], [0]>} : vector<2x1x8xf32>, vector<2x8x32xf32>, vector<2x1x32xf32> -> vector<2x1x32xf32>
    "tpu.trace_stop"() : () -> ()
    %c0_19 = arith.constant 0 : index
    %c0_20 = arith.constant 0 : index
    %c0_21 = arith.constant 0 : index
    %26 = vector.load %arg7[%c0_19, %c0_20, %c0_21] : memref<2x1x32xf32, #tpu.memory_space<vmem>>, vector<2x1x32xf32>
    tpu.vector_store %arg7[%c0_19, %c0_20, %c0_21], %25 {strides = array<i32>} : memref<2x1x32xf32, #tpu.memory_space<vmem>>, vector<2x1x32xf32>,
    return
  }
  func.func @transform_0(%arg0: i32) -> (i32, i32) {
    %c0_i32 = arith.constant 0 : i32
    %c0_i32_0 = arith.constant 0 : i32
    return %arg0, %c0_i32 : i32, i32
  }
  func.func @transform_1(%arg0: i32) -> (i32, i32, i32) {
    %c0_i32 = arith.constant 0 : i32
    %c0_i32_0 = arith.constant 0 : i32
    %c0_i32_1 = arith.constant 0 : i32
    return %arg0, %c0_i32, %c0_i32_0 : i32, i32, i32
  }
  func.func @transform_2(%arg0: i32) -> (i32, i32, i32) {
    %c0_i32 = arith.constant 0 : i32
    %c0_i32_0 = arith.constant 0 : i32
    %c0_i32_1 = arith.constant 0 : i32
    return %arg0, %c0_i32, %c0_i32_0 : i32, i32, i32
  }
  func.func @transform_3(%arg0: i32) -> (i32, i32, i32) {
    %c0_i32 = arith.constant 0 : i32
    %c0_i32_0 = arith.constant 0 : i32
    %c0_i32_1 = arith.constant 0 : i32
    return %arg0, %c0_i32, %c0_i32_0 : i32, i32, i32
  }
  func.func @transform_4(%arg0: i32) -> (i32, i32) {
    %c0_i32 = arith.constant 0 : i32
    %c0_i32_0 = arith.constant 0 : i32
    %c0_i32_1 = arith.constant 0 : i32
    return %c0_i32, %c0_i32_0 : i32, i32
  }
  func.func @transform_5(%arg0: i32) -> (i32, i32, i32) {
    %c0_i32 = arith.constant 0 : i32
    %c0_i32_0 = arith.constant 0 : i32
    %c0_i32_1 = arith.constant 0 : i32
    %c0_i32_2 = arith.constant 0 : i32
    return %c0_i32, %c0_i32_0, %c0_i32_1 : i32, i32, i32
  }
  func.func @transform_6(%arg0: i32) -> (i32, i32, i32) {
    %c0_i32 = arith.constant 0 : i32
    %c0_i32_0 = arith.constant 0 : i32
    %c0_i32_1 = arith.constant 0 : i32
    return %arg0, %c0_i32, %c0_i32_0 : i32, i32, i32
  }
}

</mosaic_0001>

<llo_original>
// kernel: tpu_custom_call.1
$region0: #{tpu_custom_call.1}
  #allocation0 [shape = 'u32[]', space=smem, size = 0x4, offset = 0x4, fixed_abs, tag = 'smem constant byte address 0x4 - core index']
  #allocation1 [shape = 'u32[144,128]{1,0:T(1,128)}', space=vmem, size = 0x12000, scoped, tag = 'internal scratch']
  %s0 = inlined_call_operand.vmem [shape: f32[16,72], index: 0, kind: input, shape index: {}]
  %s1 = inlined_call_operand.vmem [shape: f32[2,8,32], index: 1, kind: input, shape index: {}]
  %s2 = inlined_call_operand.vmem [shape: f32[2,1,32], index: 2, kind: input, shape index: {}]
  %s3 = inlined_call_operand.vmem [shape: f32[2,1,8], index: 3, kind: input, shape index: {}]
  %s4 = inlined_call_operand.vmem [shape: f32[72,32], index: 4, kind: input, shape index: {}]
  %s5 = inlined_call_operand.vmem [shape: f32[1,1,32], index: 5, kind: input, shape index: {}]
  %s6 = inlined_call_operand.hbm [shape: f32[2,1,32], index: 6, kind: output, shape index: {}]
  %s7 = sld [smem:[#allocation0]]
  $region34: #{tpu_custom_call.1} parent=0
    _
  %s9 = ssub.s32 1, %s7
  %s10 = scalar_select 0, %s9, %s7
  $region1: #{tpu_custom_call.1} parent=0
    #allocation2 [shape = 'u8[1024]{0}', space=vmem, size = 0x400, scoped, tag = 'output window, operand 0, single buffered']
    #allocation3 [shape = 's32[1]{0}', space=sflag, size = 0x4, scoped, tag = 'scoped memory for tpu_custom_call.1']
    %11 = vsyncpa [#allocation3], 0
    // Predicated region
    $region2: #{tpu_custom_call.1} parent=1 // pred_check
      _
    $region3: #{tpu_custom_call.1} parent=1 // pred_check_branch
      %13 = sbr.rel (0) target = $region5
    $region4: #{tpu_custom_call.1} parent=1 // pred_region
      _
    $region5: #{tpu_custom_call.1} parent=1 // pred_fallthru
      _
    // Predicated region
    $region6: #{tpu_custom_call.1} parent=1 // pred_check
      _
    $region7: #{tpu_custom_call.1} parent=1 // pred_check_branch
      %15 = sbr.rel (0) target = $region9
    $region8: #{tpu_custom_call.1} parent=1 // pred_region
      _
    $region9: #{tpu_custom_call.1} parent=1 // pred_fallthru
      _
    // Predicated region
    $region10: #{tpu_custom_call.1} parent=1 // pred_check
      _
    $region11: #{tpu_custom_call.1} parent=1 // pred_check_branch
      %17 = sbr.rel (0) target = $region13
    $region12: #{tpu_custom_call.1} parent=1 // pred_region
      _
    $region13: #{tpu_custom_call.1} parent=1 // pred_fallthru
      _
    // Predicated region
    $region14: #{tpu_custom_call.1} parent=1 // pred_check
      _
    $region15: #{tpu_custom_call.1} parent=1 // pred_check_branch
      %19 = sbr.rel (0) target = $region17
    $region16: #{tpu_custom_call.1} parent=1 // pred_region
      _
    $region17: #{tpu_custom_call.1} parent=1 // pred_fallthru
      _
    // Predicated region
    $region18: #{tpu_custom_call.1} parent=1 // pred_check
      _
    $region19: #{tpu_custom_call.1} parent=1 // pred_check_branch
      %21 = sbr.rel (0) target = $region21
    $region20: #{tpu_custom_call.1} parent=1 // pred_region
      _
    $region21: #{tpu_custom_call.1} parent=1 // pred_fallthru
      _
    // Predicated region
    $region22: #{tpu_custom_call.1} parent=1 // pred_check
      _
    $region23: #{tpu_custom_call.1} parent=1 // pred_check_branch
      %23 = sbr.rel (0) target = $region25
    $region24: #{tpu_custom_call.1} parent=1 // pred_region
      _
    $region25: #{tpu_custom_call.1} parent=1 // pred_fallthru
      _
    %v24 = vld [vmem:[%s0] sm:$0xff]
    %v25 = vld [vmem:[%s0 + $0x8] sm:$0xff]
    %v26 = vld [vmem:[%s4] sm:$0xff]
    %v27 = vld [vmem:[%s4 + $0x8] sm:$0xff]
    %v28 = vld [vmem:[%s4 + $0x10] sm:$0xff]
    %v29 = vld [vmem:[%s4 + $0x18] sm:$0xff]
    %v30 = vld [vmem:[%s4 + $0x20] sm:$0xff]
    %v31 = vld [vmem:[%s4 + $0x28] sm:$0xff]
    %v32 = vld [vmem:[%s4 + $0x30] sm:$0xff]
    %v33 = vld [vmem:[%s4 + $0x38] sm:$0xff]
    %v34 = vld [vmem:[%s4 + $0x40] sm:$0xff]
    %vm35 = vcmask 588800
    %v37 = vsel %vm35, %v24, 0
    %v40 = vsel %vm35, %v25, 0
    %42 = vmatprep.subr.mxu0 0.0
    %43 = vmatpush1.msra.mxu0 0.0
    %44 = vmatprep.subr.mxu0 0.0
    %45 = vmatpush1.msra.mxu0 0.0
    %46 = vmatprep.subr.mxu0 0.0
    %47 = vmatpush1.msra.mxu0 0.0
    %48 = vmatprep.subr.mxu0 0.0
    %49 = vmatpush1.msra.mxu0 0.0
    %50 = vmatprep.subr.mxu0 0.0
    %51 = vmatpush1.msra.mxu0 0.0
    %52 = vmatprep.subr.mxu0 0.0
    %53 = vmatpush1.msra.mxu0 0.0
    %54 = vmatprep.subr.mxu0 0.0
    %55 = vmatpush1.msra.mxu0 0.0
    %56 = vmatprep.subr.mxu0 0.0
    %57 = vmatpush1.msra.mxu0 %v34
    %58 = vmatprep.subr.mxu0 0.0
    %59 = vmatpush1.msra.mxu0 %v33
    %60 = vmatprep.subr.mxu0 0.0
    %61 = vmatpush1.msra.mxu0 %v32
    %62 = vmatprep.subr.mxu0 0.0
    %63 = vmatpush1.msra.mxu0 %v31
    %64 = vmatprep.subr.mxu0 0.0
    %65 = vmatpush1.msra.mxu0 %v30
    %66 = vmatprep.subr.mxu0 0.0
    %67 = vmatpush1.msra.mxu0 %v29
    %68 = vmatprep.subr.mxu0 0.0
    %69 = vmatpush1.msra.mxu0 %v28
    %70 = vmatprep.subr.mxu0 0.0
    %71 = vmatpush1.msra.mxu0 %v27
    %72 = vmatprep.subr.mxu0 0.0
    %73 = vmatpush1.msra.mxu0 %v26
    %74 = vmatprep.subr.mxu0 0.0
    %75 = vmatpush2.msra.mxu0 0.0
    %76 = vmatprep.subr.mxu0 0.0
    %77 = vmatpush2.msra.mxu0 0.0
    %78 = vmatprep.subr.mxu0 0.0
    %79 = vmatpush2.msra.mxu0 0.0
    %80 = vmatprep.subr.mxu0 0.0
    %81 = vmatpush2.msra.mxu0 0.0
    %82 = vmatprep.subr.mxu0 0.0
    %83 = vmatpush2.msra.mxu0 0.0
    %84 = vmatprep.subr.mxu0 0.0
    %85 = vmatpush2.msra.mxu0 0.0
    %86 = vmatprep.subr.mxu0 0.0
    %87 = vmatpush2.msra.mxu0 0.0
    %88 = vmatprep.subr.mxu0 0.0
    %89 = vmatpush2.msra.mxu0 0.0
    %90 = vmatprep.subr.mxu0 0.0
    %91 = vmatpush2.msra.mxu0 0.0
    %92 = vmatprep.subr.mxu0 0.0
    %93 = vmatpush2.msra.mxu0 0.0
    %94 = vmatprep.subr.mxu0 0.0
    %95 = vmatpush2.msra.mxu0 0.0
    %96 = vmatprep.subr.mxu0 0.0
    %97 = vmatpush2.msra.mxu0 0.0
    %98 = vmatprep.subr.mxu0 0.0
    %99 = vmatpush2.msra.mxu0 0.0
    %100 = vmatprep.subr.mxu0 0.0
    %101 = vmatpush2.msra.mxu0 0.0
    %102 = vmatprep.subr.mxu0 0.0
    %103 = vmatpush2.msra.mxu0 0.0
    %104 = vmatprep.subr.mxu0 0.0
    %105 = vmatpush2.msra.mxu0 0.0
    %106 = vmatprep.mubr.f32.mxu0 0.0
    %107 = vmatmul.mubr.f32.gmra.mxu0 %v37
    %v108 = vpop.f32.mrf.mxu0
    %v109 = vadd.f32 0.0, %v108
    %v110 = vpop.f32.mrf.mxu0
    %111 = vmatprep.mubr.f32.mxu0 0.0
    %112 = vmatmul.mubr.f32.gmra.mxu0 %v40
    %v113 = vpop.f32.mrf.mxu0
    %v114 = vadd.f32 0.0, %v113
    %v115 = vpop.f32.mrf.mxu0
    %116 = vdwg.mxu0
    %v117 = vld [vmem:[%s2] sm:$0x1]
    %v118 = vld [vmem:[%s2 + $0x1] sm:$0x1]
    %v121 = vlaneseq
    %v122 = vshrl.u32 %v121, 7
    %v123 = vsub.s32 0, %v122
    %v124 = vrot.slane %v117, %v123
    %v125 = vlaneseq
    %v126 = vshrl.u32 %v125, 7
    %v127 = vsub.s32 0, %v126
    %v128 = vrot.slane %v118, %v127
    %v131 = vadd.f32 %v109, %v124
    %v132 = vadd.f32 %v114, %v128
    %v133 = vtanh.pop %v131
    %v134 = vtanh.pop %v132
    %v135 = vld [vmem:[%s5] sm:$0x1]
    %v136 = vld [vmem:[%s3] sm:$0x1]
    %v137 = vld [vmem:[%s3 + $0x1] sm:$0x1]
    %vm138 = vcmask 261120
    %v140 = vsel %vm138, %v135, 0
    %v143 = vsel %vm138, %v133, 0
    %145 = vmatprep.subr.mxu0 0.0
    %146 = vmatpush1.xpose.msra.mxu0 0.0
    %147 = vmatprep.subr.mxu0 0.0
    %148 = vmatpush1.xpose.msra.mxu0 0.0
    %149 = vmatprep.subr.mxu0 0.0
    %150 = vmatpush1.xpose.msra.mxu0 0.0
    %151 = vmatprep.subr.mxu0 0.0
    %152 = vmatpush1.xpose.msra.mxu0 0.0
    %153 = vmatprep.subr.mxu0 0.0
    %154 = vmatpush1.xpose.msra.mxu0 0.0
    %155 = vmatprep.subr.mxu0 0.0
    %156 = vmatpush1.xpose.msra.mxu0 0.0
    %157 = vmatprep.subr.mxu0 0.0
    %158 = vmatpush1.xpose.msra.mxu0 0.0
    %159 = vmatprep.subr.mxu0 0.0
    %160 = vmatpush1.xpose.msra.mxu0 0.0
    %161 = vmatprep.subr.mxu0 0.0
    %162 = vmatpush1.xpose.msra.mxu0 0.0
    %163 = vmatprep.subr.mxu0 0.0
    %164 = vmatpush1.xpose.msra.mxu0 0.0
    %165 = vmatprep.subr.mxu0 0.0
    %166 = vmatpush1.xpose.msra.mxu0 0.0
    %167 = vmatprep.subr.mxu0 0.0
    %168 = vmatpush1.xpose.msra.mxu0 0.0
    %169 = vmatprep.subr.mxu0 0.0
    %170 = vmatpush1.xpose.msra.mxu0 0.0
    %171 = vmatprep.subr.mxu0 0.0
    %172 = vmatpush1.xpose.msra.mxu0 0.0
    %173 = vmatprep.subr.mxu0 0.0
    %174 = vmatpush1.xpose.msra.mxu0 0.0
    %175 = vmatprep.subr.mxu0 0.0
    %176 = vmatpush1.xpose.msra.mxu0 %v143
    %177 = vmatprep.subr.mxu0 0.0
    %178 = vmatpush2.xpose.msra.mxu0 0.0
    %179 = vmatprep.subr.mxu0 0.0
    %180 = vmatpush2.xpose.msra.mxu0 0.0
    %181 = vmatprep.subr.mxu0 0.0
    %182 = vmatpush2.xpose.msra.mxu0 0.0
    %183 = vmatprep.subr.mxu0 0.0
    %184 = vmatpush2.xpose.msra.mxu0 0.0
    %185 = vmatprep.subr.mxu0 0.0
    %186 = vmatpush2.xpose.msra.mxu0 0.0
    %187 = vmatprep.subr.mxu0 0.0
    %188 = vmatpush2.xpose.msra.mxu0 0.0
    %189 = vmatprep.subr.mxu0 0.0
    %190 = vmatpush2.xpose.msra.mxu0 0.0
    %191 = vmatprep.subr.mxu0 0.0
    %192 = vmatpush2.xpose.msra.mxu0 0.0
    %193 = vmatprep.subr.mxu0 0.0
    %194 = vmatpush2.xpose.msra.mxu0 0.0
    %195 = vmatprep.subr.mxu0 0.0
    %196 = vmatpush2.xpose.msra.mxu0 0.0
    %197 = vmatprep.subr.mxu0 0.0
    %198 = vmatpush2.xpose.msra.mxu0 0.0
    %199 = vmatprep.subr.mxu0 0.0
    %200 = vmatpush2.xpose.msra.mxu0 0.0
    %201 = vmatprep.subr.mxu0 0.0
    %202 = vmatpush2.xpose.msra.mxu0 0.0
    %203 = vmatprep.subr.mxu0 0.0
    %204 = vmatpush2.xpose.msra.mxu0 0.0
    %205 = vmatprep.subr.mxu0 0.0
    %206 = vmatpush2.xpose.msra.mxu0 0.0
    %207 = vmatprep.subr.mxu0 0.0
    %208 = vmatpush2.xpose.msra.mxu0 0.0
    %209 = vmatprep.mubr.f32.mxu0 0.0
    %210 = vmatmul.mubr.f32.gmra.mxu0 %v140
    %v211 = vpop.f32.mrf.mxu0
    %v212 = vadd.f32 %v136, %v211
    %v213 = vpop.f32.mrf.mxu0
    %214 = vdwg.mxu0
    %v216 = vsel %vm138, %v134, 0
    %218 = vmatprep.subr.mxu0 0.0
    %219 = vmatpush1.xpose.msra.mxu0 0.0
    %220 = vmatprep.subr.mxu0 0.0
    %221 = vmatpush1.xpose.msra.mxu0 0.0
    %222 = vmatprep.subr.mxu0 0.0
    %223 = vmatpush1.xpose.msra.mxu0 0.0
    %224 = vmatprep.subr.mxu0 0.0
    %225 = vmatpush1.xpose.msra.mxu0 0.0
    %226 = vmatprep.subr.mxu0 0.0
    %227 = vmatpush1.xpose.msra.mxu0 0.0
    %228 = vmatprep.subr.mxu0 0.0
    %229 = vmatpush1.xpose.msra.mxu0 0.0
    %230 = vmatprep.subr.mxu0 0.0
    %231 = vmatpush1.xpose.msra.mxu0 0.0
    %232 = vmatprep.subr.mxu0 0.0
    %233 = vmatpush1.xpose.msra.mxu0 0.0
    %234 = vmatprep.subr.mxu0 0.0
    %235 = vmatpush1.xpose.msra.mxu0 0.0
    %236 = vmatprep.subr.mxu0 0.0
    %237 = vmatpush1.xpose.msra.mxu0 0.0
    %238 = vmatprep.subr.mxu0 0.0
    %239 = vmatpush1.xpose.msra.mxu0 0.0
    %240 = vmatprep.subr.mxu0 0.0
    %241 = vmatpush1.xpose.msra.mxu0 0.0
    %242 = vmatprep.subr.mxu0 0.0
    %243 = vmatpush1.xpose.msra.mxu0 0.0
    %244 = vmatprep.subr.mxu0 0.0
    %245 = vmatpush1.xpose.msra.mxu0 0.0
    %246 = vmatprep.subr.mxu0 0.0
    %247 = vmatpush1.xpose.msra.mxu0 0.0
    %248 = vmatprep.subr.mxu0 0.0
    %249 = vmatpush1.xpose.msra.mxu0 %v216
    %250 = vmatprep.subr.mxu0 0.0
    %251 = vmatpush2.xpose.msra.mxu0 0.0
    %252 = vmatprep.subr.mxu0 0.0
    %253 = vmatpush2.xpose.msra.mxu0 0.0
    %254 = vmatprep.subr.mxu0 0.0
    %255 = vmatpush2.xpose.msra.mxu0 0.0
    %256 = vmatprep.subr.mxu0 0.0
    %257 = vmatpush2.xpose.msra.mxu0 0.0
    %258 = vmatprep.subr.mxu0 0.0
    %259 = vmatpush2.xpose.msra.mxu0 0.0
    %260 = vmatprep.subr.mxu0 0.0
    %261 = vmatpush2.xpose.msra.mxu0 0.0
    %262 = vmatprep.subr.mxu0 0.0
    %263 = vmatpush2.xpose.msra.mxu0 0.0
    %264 = vmatprep.subr.mxu0 0.0
    %265 = vmatpush2.xpose.msra.mxu0 0.0
    %266 = vmatprep.subr.mxu0 0.0
    %267 = vmatpush2.xpose.msra.mxu0 0.0
    %268 = vmatprep.subr.mxu0 0.0
    %269 = vmatpush2.xpose.msra.mxu0 0.0
    %270 = vmatprep.subr.mxu0 0.0
    %271 = vmatpush2.xpose.msra.mxu0 0.0
    %272 = vmatprep.subr.mxu0 0.0
    %273 = vmatpush2.xpose.msra.mxu0 0.0
    %274 = vmatprep.subr.mxu0 0.0
    %275 = vmatpush2.xpose.msra.mxu0 0.0
    %276 = vmatprep.subr.mxu0 0.0
    %277 = vmatpush2.xpose.msra.mxu0 0.0
    %278 = vmatprep.subr.mxu0 0.0
    %279 = vmatpush2.xpose.msra.mxu0 0.0
    %280 = vmatprep.subr.mxu0 0.0
    %281 = vmatpush2.xpose.msra.mxu0 0.0
    %282 = vmatprep.mubr.f32.mxu0 0.0
    %283 = vmatmul.mubr.f32.gmra.mxu0 %v140
    %v284 = vpop.f32.mrf.mxu0
    %v285 = vadd.f32 %v137, %v284
    %v286 = vpop.f32.mrf.mxu0
    %287 = vdwg.mxu0
    %vm288 = vcmask 57344
    %v289 = vsel %vm288, %v212, -inf
    %290 = vmax.xlane.f32.xlu0 %v289
    %v291 = vpop.xlane.xlu0 %290
    %v292 = vsel %vm288, %v285, -inf
    %293 = vmax.xlane.f32.xlu0 %v292
    %v294 = vpop.xlane.xlu0 %293
    %v295 = vsub.f32 %v212, %v291
    %v296 = vsub.f32 %v285, %v294
    %v297 = vmul.f32 %v295, 1.442695
    %v298 = vpow.pop %v297
    %v299 = vmul.f32 %v296, 1.442695
    %v300 = vpow.pop %v299
    %v301 = vsel %vm288, %v298, 0.0
    %302 = vadd.xlane.f32.xlu0 %v301
    %v303 = vpop.xlane.xlu0 %302
    %v304 = vsel %vm288, %v300, 0.0
    %305 = vadd.xlane.f32.xlu0 %v304
    %v306 = vpop.xlane.xlu0 %305
    %v307 = vrcp.pop %v303
    %v308 = vrcp.pop %v306
    %v309 = vmul.f32 %v298, %v307
    %v310 = vmul.f32 %v300, %v308
    %v311 = vld [vmem:[%s1] sm:$0xff]
    %v312 = vld [vmem:[%s1 + $0x8] sm:$0xff]
    %vm313 = vcmask 64512
    %v315 = vsel %vm313, %v309, 0
    %317 = vmatprep.subr.mxu0 0.0
    %318 = vmatpush1.msra.mxu0 0.0
    %319 = vmatprep.subr.mxu0 0.0
    %320 = vmatpush1.msra.mxu0 0.0
    %321 = vmatprep.subr.mxu0 0.0
    %322 = vmatpush1.msra.mxu0 0.0
    %323 = vmatprep.subr.mxu0 0.0
    %324 = vmatpush1.msra.mxu0 0.0
    %325 = vmatprep.subr.mxu0 0.0
    %326 = vmatpush1.msra.mxu0 0.0
    %327 = vmatprep.subr.mxu0 0.0
    %328 = vmatpush1.msra.mxu0 0.0
    %329 = vmatprep.subr.mxu0 0.0
    %330 = vmatpush1.msra.mxu0 0.0
    %331 = vmatprep.subr.mxu0 0.0
    %332 = vmatpush1.msra.mxu0 0.0
    %333 = vmatprep.subr.mxu0 0.0
    %334 = vmatpush1.msra.mxu0 0.0
    %335 = vmatprep.subr.mxu0 0.0
    %336 = vmatpush1.msra.mxu0 0.0
    %337 = vmatprep.subr.mxu0 0.0
    %338 = vmatpush1.msra.mxu0 0.0
    %339 = vmatprep.subr.mxu0 0.0
    %340 = vmatpush1.msra.mxu0 0.0
    %341 = vmatprep.subr.mxu0 0.0
    %342 = vmatpush1.msra.mxu0 0.0
    %343 = vmatprep.subr.mxu0 0.0
    %344 = vmatpush1.msra.mxu0 0.0
    %345 = vmatprep.subr.mxu0 0.0
    %346 = vmatpush1.msra.mxu0 0.0
    %347 = vmatprep.subr.mxu0 0.0
    %348 = vmatpush1.msra.mxu0 %v311
    %349 = vmatprep.subr.mxu0 0.0
    %350 = vmatpush2.msra.mxu0 0.0
    %351 = vmatprep.subr.mxu0 0.0
    %352 = vmatpush2.msra.mxu0 0.0
    %353 = vmatprep.subr.mxu0 0.0
    %354 = vmatpush2.msra.mxu0 0.0
    %355 = vmatprep.subr.mxu0 0.0
    %356 = vmatpush2.msra.mxu0 0.0
    %357 = vmatprep.subr.mxu0 0.0
    %358 = vmatpush2.msra.mxu0 0.0
    %359 = vmatprep.subr.mxu0 0.0
    %360 = vmatpush2.msra.mxu0 0.0
    %361 = vmatprep.subr.mxu0 0.0
    %362 = vmatpush2.msra.mxu0 0.0
    %363 = vmatprep.subr.mxu0 0.0
    %364 = vmatpush2.msra.mxu0 0.0
    %365 = vmatprep.subr.mxu0 0.0
    %366 = vmatpush2.msra.mxu0 0.0
    %367 = vmatprep.subr.mxu0 0.0
    %368 = vmatpush2.msra.mxu0 0.0
    %369 = vmatprep.subr.mxu0 0.0
    %370 = vmatpush2.msra.mxu0 0.0
    %371 = vmatprep.subr.mxu0 0.0
    %372 = vmatpush2.msra.mxu0 0.0
    %373 = vmatprep.subr.mxu0 0.0
    %374 = vmatpush2.msra.mxu0 0.0
    %375 = vmatprep.subr.mxu0 0.0
    %376 = vmatpush2.msra.mxu0 0.0
    %377 = vmatprep.subr.mxu0 0.0
    %378 = vmatpush2.msra.mxu0 0.0
    %379 = vmatprep.subr.mxu0 0.0
    %380 = vmatpush2.msra.mxu0 0.0
    %381 = vmatprep.mubr.f32.mxu0 0.0
    %382 = vmatmul.mubr.f32.gmra.mxu0 %v315
    %v383 = vpop.f32.mrf.mxu0
    %v384 = vadd.f32 0.0, %v383
    %v385 = vpop.f32.mrf.mxu0
    %386 = vdwg.mxu0
    %v388 = vsel %vm313, %v310, 0
    %390 = vmatprep.subr.mxu0 0.0
    %391 = vmatpush1.msra.mxu0 0.0
    %392 = vmatprep.subr.mxu0 0.0
    %393 = vmatpush1.msra.mxu0 0.0
    %394 = vmatprep.subr.mxu0 0.0
    %395 = vmatpush1.msra.mxu0 0.0
    %396 = vmatprep.subr.mxu0 0.0
    %397 = vmatpush1.msra.mxu0 0.0
    %398 = vmatprep.subr.mxu0 0.0
    %399 = vmatpush1.msra.mxu0 0.0
    %400 = vmatprep.subr.mxu0 0.0
    %401 = vmatpush1.msra.mxu0 0.0
    %402 = vmatprep.subr.mxu0 0.0
    %403 = vmatpush1.msra.mxu0 0.0
    %404 = vmatprep.subr.mxu0 0.0
    %405 = vmatpush1.msra.mxu0 0.0
    %406 = vmatprep.subr.mxu0 0.0
    %407 = vmatpush1.msra.mxu0 0.0
    %408 = vmatprep.subr.mxu0 0.0
    %409 = vmatpush1.msra.mxu0 0.0
    %410 = vmatprep.subr.mxu0 0.0
    %411 = vmatpush1.msra.mxu0 0.0
    %412 = vmatprep.subr.mxu0 0.0
    %413 = vmatpush1.msra.mxu0 0.0
    %414 = vmatprep.subr.mxu0 0.0
    %415 = vmatpush1.msra.mxu0 0.0
    %416 = vmatprep.subr.mxu0 0.0
    %417 = vmatpush1.msra.mxu0 0.0
    %418 = vmatprep.subr.mxu0 0.0
    %419 = vmatpush1.msra.mxu0 0.0
    %420 = vmatprep.subr.mxu0 0.0
    %421 = vmatpush1.msra.mxu0 %v312
    %422 = vmatprep.subr.mxu0 0.0
    %423 = vmatpush2.msra.mxu0 0.0
    %424 = vmatprep.subr.mxu0 0.0
    %425 = vmatpush2.msra.mxu0 0.0
    %426 = vmatprep.subr.mxu0 0.0
    %427 = vmatpush2.msra.mxu0 0.0
    %428 = vmatprep.subr.mxu0 0.0
    %429 = vmatpush2.msra.mxu0 0.0
    %430 = vmatprep.subr.mxu0 0.0
    %431 = vmatpush2.msra.mxu0 0.0
    %432 = vmatprep.subr.mxu0 0.0
    %433 = vmatpush2.msra.mxu0 0.0
    %434 = vmatprep.subr.mxu0 0.0
    %435 = vmatpush2.msra.mxu0 0.0
    %436 = vmatprep.subr.mxu0 0.0
    %437 = vmatpush2.msra.mxu0 0.0
    %438 = vmatprep.subr.mxu0 0.0
    %439 = vmatpush2.msra.mxu0 0.0
    %440 = vmatprep.subr.mxu0 0.0
    %441 = vmatpush2.msra.mxu0 0.0
    %442 = vmatprep.subr.mxu0 0.0
    %443 = vmatpush2.msra.mxu0 0.0
    %444 = vmatprep.subr.mxu0 0.0
    %445 = vmatpush2.msra.mxu0 0.0
    %446 = vmatprep.subr.mxu0 0.0
    %447 = vmatpush2.msra.mxu0 0.0
    %448 = vmatprep.subr.mxu0 0.0
    %449 = vmatpush2.msra.mxu0 0.0
    %450 = vmatprep.subr.mxu0 0.0
    %451 = vmatpush2.msra.mxu0 0.0
    %452 = vmatprep.subr.mxu0 0.0
    %453 = vmatpush2.msra.mxu0 0.0
    %454 = vmatprep.mubr.f32.mxu0 0.0
    %455 = vmatmul.mubr.f32.gmra.mxu0 %v388
    %v456 = vpop.f32.mrf.mxu0
    %v457 = vadd.f32 0.0, %v456
    %v458 = vpop.f32.mrf.mxu0
    %459 = vdwg.mxu0
    %vm460 = vcmask 253952
    %461 = vst.msk [vmem:[#allocation2] sm:$0x1] %vm460, %v384
    %462 = vst.msk [vmem:[#allocation2 + $0x1] sm:$0x1] %vm460, %v457
    // Predicated region
    $region26: #{tpu_custom_call.1} parent=1 // pred_check
      _
    $region27: #{tpu_custom_call.1} parent=1 // pred_check_branch
      %464 = sbr.rel (0) target = $region29
    $region28: #{tpu_custom_call.1} parent=1 // pred_region
      %s466 = ssub.s32 32, 32
      %467 = vsyncadd [#allocation3], %s466
      %s468 = sshll.u32 [#allocation2], 4
      %s469 = int_to_ptr.vmem [resolvable:$true] %s468
      %474 = dma.vmem_to_hbm [thread:$0]  %s469, 32, %s6, [#allocation3], 16, 16, 1
    $region29: #{tpu_custom_call.1} parent=1 // pred_fallthru
      _
    // Predicated region
    $region30: #{tpu_custom_call.1} parent=1 // pred_check
      _
    $region31: #{tpu_custom_call.1} parent=1 // pred_check_branch
      %476 = sbr.rel (0) target = $region33
    $region32: #{tpu_custom_call.1} parent=1 // pred_region
      %477 = dma.done [#allocation3], 32
    $region33: #{tpu_custom_call.1} parent=1 // pred_fallthru
      _
    %478 = vsyncpa [#allocation3], 1

</llo_original>
